<compile_context>
chip_gen: v7x
topology: tpu7x:2x2x1
jax: 0.10.0
libtpu: 0.0.40
codegen_flags: <defaults>
</compile_context>

<pallas_src>
import jax
import jax.numpy as jnp
from jax.experimental import pallas as pl
from jax.experimental.pallas import tpu as pltpu

# Problem sizes (batch, divisions, raw features/division, map dim m, TR rank r, categories)
B, D, N_FEAT, M, R, C = 8, 4, 16, 32, 4, 4
CRR = C * R * R            # 64  : per-division (category, i, j) lane block
EXPW = R * CRR             # 256 : k-expanded per-operand lane block
assert D == 4, "weight packing folds both bmm operands of each half-chain; needs D == 4"


def trnet_kernel(x_ref, w_ref, b_ref, s_ref, out_ref):
    # TODO(synk): FeatureMap source not provided; implemented as a shared Linear(n, m)
    #             per division (matches its m*n + m parameter count), no nonlinearity —
    #             the wrapper-side FeatureMap/core fusion relies on this.
    # (1) ONE MXU push: FeatureMap + all C*D ring-core contractions + k-broadcasts,
    #     all pre-fused into w_ref/b_ref wrapper-side.  ex: (B, 4*EXPW) = (8, 1024).
    ex = jnp.dot(x_ref[...], w_ref[...], preferred_element_type=jnp.float32) + b_ref[...]

    # (2) Pairing-identity epilogue, all 2-D and lane-dense.
    #     lanes [0:512) = [A0 | A3], lanes [512:1024) = [B1 | B2]  (see header), so one
    #     vreg-aligned multiply yields [e_left | e_right]:
    #       e_left [k,c,i,j] = G0[c,i,k] * G1[c,k,j]
    #       e_right[k,c,i,j] = G3[c,k,i] * G2[c,j,k]
    e = ex[:, : 2 * EXPW] * ex[:, 2 * EXPW:]                        # (8, 512)

    def ksum(blk):
        # Sum the R=4 k-chunks (64 lanes each): tree order so the first add uses
        # 128-lane (vreg-aligned) slices and only the last fold needs a 64-lane rotate.
        half = blk[:, : 2 * CRR] + blk[:, 2 * CRR:]                 # [k0+k2 | k1+k3]
        return half[:, :CRR] + half[:, CRR:]                        # (8, 64)

    left = ksum(e[:, :EXPW])            # (G0 @ G1)[c,i,j]
    right_t = ksum(e[:, EXPW:])         # ((G2 @ G3)^T)[c,i,j]
    prod = left * right_t               # (8, 64); trace_c = sum of lanes in block c

    # (3) per-category trace-sum folded into a tiny MXU matmul with a fixed 0/1
    #     (CRR, C) selection matrix -> logits come out directly as (B, C).
    logits = jnp.dot(prod, s_ref[...], preferred_element_type=jnp.float32)

    # (4) log_softmax over categories.
    mx = jnp.max(logits, axis=1, keepdims=True)
    z = logits - mx
    lse = jnp.log(jnp.sum(jnp.exp(z), axis=1, keepdims=True))
    out_ref[...] = z - lse


def pack_params(wfm, bfm, cores_5d):
    """Wrapper-side (XLA, one-time) fusion of all module parameters — zero kernel cost.

    Returns:
      w_big (D*n, 4*EXPW): x_flat @ w_big + b_big directly yields the four k-broadcast
          bmm operands [A0 | A3 | B1 | B2] described in the kernel header.  The
          FeatureMap Linear is folded in at precision='highest'.
      b_big (1, 4*EXPW)
      s_mat (CRR, C): 0/1 per-category trace-sum selector.
    """
    n, m = wfm.shape
    c, d_, r = cores_5d.shape[0], cores_5d.shape[1], cores_5d.shape[2]

    def expand(d, mode):
        # cores_5d[c, d, a, m, b]:  G_d[batch, c, a, b] = sum_m phi_d[batch, m] * core.
        cd = cores_5d[:, d]                                  # axes [c, a, m, b]
        if mode == "A0":      # want [m,k,c,i,j] = cd[c,i,m,k]   (broadcast over j)
            t = jnp.transpose(cd, (2, 3, 0, 1))              # [m, k, c, i]
            e = jnp.broadcast_to(t[:, :, :, :, None], (m, r, c, r, r))
        elif mode == "A3":    # want [m,k,c,i,j] = cd[c,k,m,i]   (broadcast over j)
            t = jnp.transpose(cd, (2, 1, 0, 3))              # [m, k, c, i]
            e = jnp.broadcast_to(t[:, :, :, :, None], (m, r, c, r, r))
        elif mode == "B1":    # want [m,k,c,i,j] = cd[c,k,m,j]   (broadcast over i)
            t = jnp.transpose(cd, (2, 1, 0, 3))              # [m, k, c, j]
            e = jnp.broadcast_to(t[:, :, :, None, :], (m, r, c, r, r))
        else:                 # "B2": [m,k,c,i,j] = cd[c,j,m,k]  (broadcast over i)
            t = jnp.transpose(cd, (2, 3, 0, 1))              # [m, k, c, j]
            e = jnp.broadcast_to(t[:, :, :, None, :], (m, r, c, r, r))
        return e.reshape(m, r * c * r * r)                   # (m, EXPW)

    # Column order [A0 | A3 | B1 | B2] <- divisions [0, 3, 1, 2]; the second-half
    # divisions are packed transposed (A3, B2) for the trace-pairing identity.
    specs = [(0, "A0"), (3, "A3"), (1, "B1"), (2, "B2")]
    expw = r * c * r * r
    w_big = jnp.zeros((d_ * n, len(specs) * expw), jnp.float32)
    b_big = jnp.zeros((1, len(specs) * expw), jnp.float32)
    for col, (d, mode) in enumerate(specs):
        ed = expand(d, mode)                                                  # (m, EXPW)
        wblk = jnp.einsum("nm,ml->nl", wfm, ed, precision="highest")          # fold FeatureMap
        bblk = jnp.einsum("m,ml->l", bfm[0], ed, precision="highest")
        w_big = w_big.at[d * n:(d + 1) * n, col * expw:(col + 1) * expw].set(wblk)
        b_big = b_big.at[0, col * expw:(col + 1) * expw].set(bblk)

    s_mat = jnp.kron(jnp.eye(c, dtype=jnp.float32), jnp.ones((r * r, 1), jnp.float32))
    return w_big, b_big, s_mat


def trnet_forward(x, w_big, b_big, s_mat):
    x_flat = x.reshape(x.shape[0], -1)            # (B, D*n), wrapper-side reshape (free)
    return pl.pallas_call(
        trnet_kernel,
        out_shape=jax.ShapeDtypeStruct((B, C), jnp.float32),
        in_specs=[pl.BlockSpec(memory_space=pltpu.MemorySpace.VMEM)] * 4,
        out_specs=pl.BlockSpec(memory_space=pltpu.MemorySpace.VMEM),
    )(x_flat, w_big, b_big, s_mat)


def trnet_ref(x, wfm, bfm, cores_5d):
    """Pure-JAX reference (cores_5d: (C, D, r, m, r))."""
    phi = jnp.einsum('bdn,nm->bdm', x, wfm, precision='highest') + bfm[0]
    g = jnp.einsum('bdm,cdimj->cbdij', phi, cores_5d, precision='highest')  # (C,B,D,r,r)
    prod = g[:, :, 0]
    for d in range(1, D):
        prod = jnp.einsum('cbij,cbjk->cbik', prod, g[:, :, d], precision='highest')
    tr = jnp.trace(prod, axis1=-2, axis2=-1)            # (C, B)
    return jax.nn.log_softmax(tr.T, axis=1)             # (B, C)


if __name__ == "__main__":
    key = jax.random.PRNGKey(0)
    k1, k2, k3, k4 = jax.random.split(key, 4)

    x = jax.random.normal(k1, (B, D, N_FEAT), jnp.float32)
    wfm = jax.random.normal(k2, (N_FEAT, M), jnp.float32) * 0.2          # FeatureMap weight
    bfm = jax.random.normal(k3, (1, M), jnp.float32) * 0.1               # FeatureMap bias
    # CoreKernelTensorRing weights: one (r_i, m, r_j) core per (category, division),
    # uniform ring rank r (ring closure r_0 == r_D required for the trace).
    cores_5d = jax.random.normal(k4, (C, D, R, M, R), jnp.float32) * 0.2

    w_big, b_big, s_mat = pack_params(wfm, bfm, cores_5d)

    out = trnet_forward(x, w_big, b_big, s_mat)
    out = jax.block_until_ready(out)

    ref = trnet_ref(x, wfm, bfm, cores_5d)
    assert out.shape == (B, C)
    assert jnp.allclose(out, ref, atol=1e-2, rtol=1e-2), (out, ref)

    print("KERNEL_OK")
</pallas_src>

<mosaic_0001>
module attributes {stable_mosaic.version = 11 : i64} {
  func.func @trnet_kernel(%arg0: memref<8x64xf32, #tpu.memory_space<vmem>>, %arg1: memref<64x1024xf32, #tpu.memory_space<vmem>>, %arg2: memref<1x1024xf32, #tpu.memory_space<vmem>>, %arg3: memref<64x4xf32, #tpu.memory_space<vmem>>, %arg4: memref<8x4xf32, #tpu.memory_space<vmem>>) attributes {dimension_semantics = [], scalar_prefetch = 0 : i64, scratch_operands = 0 : i64, tpu.core_type = #tpu.core_type<tc>} {
    %c0 = arith.constant 0 : index
    %c0_0 = arith.constant 0 : index
    %0 = vector.load %arg0[%c0, %c0_0] : memref<8x64xf32, #tpu.memory_space<vmem>>, vector<8x64xf32>
    %c0_1 = arith.constant 0 : index
    %c0_2 = arith.constant 0 : index
    %1 = vector.load %arg1[%c0_1, %c0_2] : memref<64x1024xf32, #tpu.memory_space<vmem>>, vector<64x1024xf32>
    %cst = arith.constant dense<0.000000e+00> : vector<8x1024xf32>
    %2 = tpu.matmul %0, %1, %cst {dimension_numbers = #tpu.dot_dimension_numbers<[1], [0], [0], [1], [0, 0, 1, 1], [], []>} : vector<8x64xf32>, vector<64x1024xf32>, vector<8x1024xf32> -> vector<8x1024xf32>
    %c0_3 = arith.constant 0 : index
    %c0_4 = arith.constant 0 : index
    %3 = vector.load %arg2[%c0_3, %c0_4] : memref<1x1024xf32, #tpu.memory_space<vmem>>, vector<1x1024xf32>
    %4 = vector.broadcast %3 : vector<1x1024xf32> to vector<8x1024xf32>
    %5 = arith.addf %2, %4 : vector<8x1024xf32>
    %6 = vector.extract_strided_slice %5 {offsets = [0, 0], sizes = [8, 512], strides = [1, 1]} : vector<8x1024xf32> to vector<8x512xf32>
    %7 = vector.extract_strided_slice %5 {offsets = [0, 512], sizes = [8, 512], strides = [1, 1]} : vector<8x1024xf32> to vector<8x512xf32>
    %8 = arith.mulf %6, %7 : vector<8x512xf32>
    %9 = vector.extract_strided_slice %8 {offsets = [0, 0], sizes = [8, 256], strides = [1, 1]} : vector<8x512xf32> to vector<8x256xf32>
    %10 = vector.extract_strided_slice %9 {offsets = [0, 0], sizes = [8, 128], strides = [1, 1]} : vector<8x256xf32> to vector<8x128xf32>
    %11 = vector.extract_strided_slice %9 {offsets = [0, 128], sizes = [8, 128], strides = [1, 1]} : vector<8x256xf32> to vector<8x128xf32>
    %12 = arith.addf %10, %11 : vector<8x128xf32>
    %13 = vector.extract_strided_slice %12 {offsets = [0, 0], sizes = [8, 64], strides = [1, 1]} : vector<8x128xf32> to vector<8x64xf32>
    %14 = vector.extract_strided_slice %12 {offsets = [0, 64], sizes = [8, 64], strides = [1, 1]} : vector<8x128xf32> to vector<8x64xf32>
    %15 = arith.addf %13, %14 : vector<8x64xf32>
    %16 = vector.extract_strided_slice %8 {offsets = [0, 256], sizes = [8, 256], strides = [1, 1]} : vector<8x512xf32> to vector<8x256xf32>
    %17 = vector.extract_strided_slice %16 {offsets = [0, 0], sizes = [8, 128], strides = [1, 1]} : vector<8x256xf32> to vector<8x128xf32>
    %18 = vector.extract_strided_slice %16 {offsets = [0, 128], sizes = [8, 128], strides = [1, 1]} : vector<8x256xf32> to vector<8x128xf32>
    %19 = arith.addf %17, %18 : vector<8x128xf32>
    %20 = vector.extract_strided_slice %19 {offsets = [0, 0], sizes = [8, 64], strides = [1, 1]} : vector<8x128xf32> to vector<8x64xf32>
    %21 = vector.extract_strided_slice %19 {offsets = [0, 64], sizes = [8, 64], strides = [1, 1]} : vector<8x128xf32> to vector<8x64xf32>
    %22 = arith.addf %20, %21 : vector<8x64xf32>
    %23 = arith.mulf %15, %22 : vector<8x64xf32>
    %c0_5 = arith.constant 0 : index
    %c0_6 = arith.constant 0 : index
    %24 = vector.load %arg3[%c0_5, %c0_6] : memref<64x4xf32, #tpu.memory_space<vmem>>, vector<64x4xf32>
    %cst_7 = arith.constant dense<0.000000e+00> : vector<8x4xf32>
    %25 = tpu.matmul %23, %24, %cst_7 {dimension_numbers = #tpu.dot_dimension_numbers<[1], [0], [0], [1], [0, 0, 1, 1], [], []>} : vector<8x64xf32>, vector<64x4xf32>, vector<8x4xf32> -> vector<8x4xf32>
    %cst_8 = arith.constant dense<0xFF800000> : vector<8xf32>
    %26 = vector.multi_reduction <maximumf>, %25, %cst_8 [1] : vector<8x4xf32> to vector<8xf32>
    %27 = vector.shape_cast %26 : vector<8xf32> to vector<8x1xf32>
    %28 = vector.broadcast %27 : vector<8x1xf32> to vector<8x4xf32>
    %29 = arith.subf %25, %28 : vector<8x4xf32>
    %30 = math.exp %29 : vector<8x4xf32>
    %cst_9 = arith.constant dense<0.000000e+00> : vector<8xf32>
    %31 = vector.multi_reduction <add>, %30, %cst_9 [1] : vector<8x4xf32> to vector<8xf32>
    %32 = vector.shape_cast %31 : vector<8xf32> to vector<8x1xf32>
    %33 = math.log %32 : vector<8x1xf32>
    %34 = vector.broadcast %33 : vector<8x1xf32> to vector<8x4xf32>
    %35 = arith.subf %29, %34 : vector<8x4xf32>
    %c0_10 = arith.constant 0 : index
    %c0_11 = arith.constant 0 : index
    %36 = vector.load %arg4[%c0_10, %c0_11] : memref<8x4xf32, #tpu.memory_space<vmem>>, vector<8x4xf32>
    tpu.vector_store %arg4[%c0_10, %c0_11], %35 {strides = array<i32>} : memref<8x4xf32, #tpu.memory_space<vmem>>, vector<8x4xf32>,
    return
  }
}

</mosaic_0001>

<llo_original>
// kernel: tpu_custom_call.1
$region0: #{tpu_custom_call.1}
  #allocation0 [shape = 'u32[]', space=smem, size = 0x4, offset = 0x4, fixed_abs, tag = 'smem constant byte address 0x4 - core index']
  #allocation1 [shape = 'u32[144,128]{1,0:T(1,128)}', space=vmem, size = 0x12000, scoped, tag = 'internal scratch']
  %s0 = inlined_call_operand.vmem [shape: f32[8,64], index: 0, kind: input, shape index: {}]
  %s1 = inlined_call_operand.hbm [shape: f32[64,1024], index: 1, kind: input, shape index: {}]
  %s2 = inlined_call_operand.vmem [shape: f32[1,1024], index: 2, kind: input, shape index: {}]
  %s3 = inlined_call_operand.vmem [shape: f32[64,4], index: 3, kind: input, shape index: {}]
  %s4 = inlined_call_operand.vmem [shape: f32[8,4], index: 4, kind: output, shape index: {}]
  %s5 = sld [smem:[#allocation0]]
  $region30: #{tpu_custom_call.1} parent=0
    _
  %s7 = ssub.s32 1, %s5
  %s8 = scalar_select 0, %s7, %s5
  $region1: #{tpu_custom_call.1} parent=0
    #allocation2 [shape = 'u8[262144]{0}', space=vmem, size = 0x40000, scoped, tag = 'input window, operand 1, single buffered']
    #allocation3 [shape = 's32[1]{0}', space=sflag, size = 0x4, scoped, tag = 'scoped memory for tpu_custom_call.1']
    %9 = vsyncpa [#allocation3], 0
    // Predicated region
    $region2: #{tpu_custom_call.1} parent=1 // pred_check
      _
    $region3: #{tpu_custom_call.1} parent=1 // pred_check_branch
      %11 = sbr.rel (0) target = $region5
    $region4: #{tpu_custom_call.1} parent=1 // pred_region
      _
    $region5: #{tpu_custom_call.1} parent=1 // pred_fallthru
      _
    // Predicated region
    $region6: #{tpu_custom_call.1} parent=1 // pred_check
      _
    $region7: #{tpu_custom_call.1} parent=1 // pred_check_branch
      %13 = sbr.rel (0) target = $region9
    $region8: #{tpu_custom_call.1} parent=1 // pred_region
      %s15 = ssub.s32 8192, 8192
      %16 = vsyncadd [#allocation3], %s15
      %s17 = sshll.u32 [#allocation2], 4
      %s18 = int_to_ptr.vmem [resolvable:$true] %s17
      %23 = dma.hbm_to_vmem [thread:$0]  %s1, 8192, %s18, [#allocation3], 1024, 1024, 64
    $region9: #{tpu_custom_call.1} parent=1 // pred_fallthru
      _
    // Predicated region
    $region10: #{tpu_custom_call.1} parent=1 // pred_check
      _
    $region11: #{tpu_custom_call.1} parent=1 // pred_check_branch
      %25 = sbr.rel (0) target = $region13
    $region12: #{tpu_custom_call.1} parent=1 // pred_region
      _
    $region13: #{tpu_custom_call.1} parent=1 // pred_fallthru
      _
    // Predicated region
    $region14: #{tpu_custom_call.1} parent=1 // pred_check
      _
    $region15: #{tpu_custom_call.1} parent=1 // pred_check_branch
      %27 = sbr.rel (0) target = $region17
    $region16: #{tpu_custom_call.1} parent=1 // pred_region
      _
    $region17: #{tpu_custom_call.1} parent=1 // pred_fallthru
      _
    // Predicated region
    $region18: #{tpu_custom_call.1} parent=1 // pred_check
      _
    $region19: #{tpu_custom_call.1} parent=1 // pred_check_branch
      %29 = sbr.rel (0) target = $region21
    $region20: #{tpu_custom_call.1} parent=1 // pred_region
      %30 = dma.done [#allocation3], 8192
    $region21: #{tpu_custom_call.1} parent=1 // pred_fallthru
      _
    %v31 = vld [vmem:[%s0] sm:$0xff]
    %v32 = vld [vmem:[#allocation2] sm:$0xff]
    %v33 = vld [vmem:[#allocation2 + $0x8] sm:$0xff]
    %v34 = vld [vmem:[#allocation2 + $0x10] sm:$0xff]
    %v35 = vld [vmem:[#allocation2 + $0x18] sm:$0xff]
    %v36 = vld [vmem:[#allocation2 + $0x20] sm:$0xff]
    %v37 = vld [vmem:[#allocation2 + $0x28] sm:$0xff]
    %v38 = vld [vmem:[#allocation2 + $0x30] sm:$0xff]
    %v39 = vld [vmem:[#allocation2 + $0x38] sm:$0xff]
    %v40 = vld [vmem:[#allocation2 + $0x40] sm:$0xff]
    %v41 = vld [vmem:[#allocation2 + $0x48] sm:$0xff]
    %v42 = vld [vmem:[#allocation2 + $0x50] sm:$0xff]
    %v43 = vld [vmem:[#allocation2 + $0x58] sm:$0xff]
    %v44 = vld [vmem:[#allocation2 + $0x60] sm:$0xff]
    %v45 = vld [vmem:[#allocation2 + $0x68] sm:$0xff]
    %v46 = vld [vmem:[#allocation2 + $0x70] sm:$0xff]
    %v47 = vld [vmem:[#allocation2 + $0x78] sm:$0xff]
    %v48 = vld [vmem:[#allocation2 + $0x80] sm:$0xff]
    %v49 = vld [vmem:[#allocation2 + $0x88] sm:$0xff]
    %v50 = vld [vmem:[#allocation2 + $0x90] sm:$0xff]
    %v51 = vld [vmem:[#allocation2 + $0x98] sm:$0xff]
    %v52 = vld [vmem:[#allocation2 + $0xa0] sm:$0xff]
    %v53 = vld [vmem:[#allocation2 + $0xa8] sm:$0xff]
    %v54 = vld [vmem:[#allocation2 + $0xb0] sm:$0xff]
    %v55 = vld [vmem:[#allocation2 + $0xb8] sm:$0xff]
    %v56 = vld [vmem:[#allocation2 + $0xc0] sm:$0xff]
    %v57 = vld [vmem:[#allocation2 + $0xc8] sm:$0xff]
    %v58 = vld [vmem:[#allocation2 + $0xd0] sm:$0xff]
    %v59 = vld [vmem:[#allocation2 + $0xd8] sm:$0xff]
    %v60 = vld [vmem:[#allocation2 + $0xe0] sm:$0xff]
    %v61 = vld [vmem:[#allocation2 + $0xe8] sm:$0xff]
    %v62 = vld [vmem:[#allocation2 + $0xf0] sm:$0xff]
    %v63 = vld [vmem:[#allocation2 + $0xf8] sm:$0xff]
    %v64 = vld [vmem:[#allocation2 + $0x100] sm:$0xff]
    %v65 = vld [vmem:[#allocation2 + $0x108] sm:$0xff]
    %v66 = vld [vmem:[#allocation2 + $0x110] sm:$0xff]
    %v67 = vld [vmem:[#allocation2 + $0x118] sm:$0xff]
    %v68 = vld [vmem:[#allocation2 + $0x120] sm:$0xff]
    %v69 = vld [vmem:[#allocation2 + $0x128] sm:$0xff]
    %v70 = vld [vmem:[#allocation2 + $0x130] sm:$0xff]
    %v71 = vld [vmem:[#allocation2 + $0x138] sm:$0xff]
    %v72 = vld [vmem:[#allocation2 + $0x140] sm:$0xff]
    %v73 = vld [vmem:[#allocation2 + $0x148] sm:$0xff]
    %v74 = vld [vmem:[#allocation2 + $0x150] sm:$0xff]
    %v75 = vld [vmem:[#allocation2 + $0x158] sm:$0xff]
    %v76 = vld [vmem:[#allocation2 + $0x160] sm:$0xff]
    %v77 = vld [vmem:[#allocation2 + $0x168] sm:$0xff]
    %v78 = vld [vmem:[#allocation2 + $0x170] sm:$0xff]
    %v79 = vld [vmem:[#allocation2 + $0x178] sm:$0xff]
    %v80 = vld [vmem:[#allocation2 + $0x180] sm:$0xff]
    %v81 = vld [vmem:[#allocation2 + $0x188] sm:$0xff]
    %v82 = vld [vmem:[#allocation2 + $0x190] sm:$0xff]
    %v83 = vld [vmem:[#allocation2 + $0x198] sm:$0xff]
    %v84 = vld [vmem:[#allocation2 + $0x1a0] sm:$0xff]
    %v85 = vld [vmem:[#allocation2 + $0x1a8] sm:$0xff]
    %v86 = vld [vmem:[#allocation2 + $0x1b0] sm:$0xff]
    %v87 = vld [vmem:[#allocation2 + $0x1b8] sm:$0xff]
    %v88 = vld [vmem:[#allocation2 + $0x1c0] sm:$0xff]
    %v89 = vld [vmem:[#allocation2 + $0x1c8] sm:$0xff]
    %v90 = vld [vmem:[#allocation2 + $0x1d0] sm:$0xff]
    %v91 = vld [vmem:[#allocation2 + $0x1d8] sm:$0xff]
    %v92 = vld [vmem:[#allocation2 + $0x1e0] sm:$0xff]
    %v93 = vld [vmem:[#allocation2 + $0x1e8] sm:$0xff]
    %v94 = vld [vmem:[#allocation2 + $0x1f0] sm:$0xff]
    %v95 = vld [vmem:[#allocation2 + $0x1f8] sm:$0xff]
    %v96 = vld [vmem:[%s2] sm:$0xff]
    %v98 = vlaneseq
    %v99 = vshrl.u32 %v98, 7
    %v100 = vsub.s32 0, %v99
    %v101 = vrot.slane %v96, %v100
    %v102 = vlaneseq
    %v103 = vshrl.u32 %v102, 7
    %v104 = vsub.s32 1, %v103
    %v105 = vrot.slane %v96, %v104
    %v106 = vlaneseq
    %v107 = vshrl.u32 %v106, 7
    %v108 = vsub.s32 2, %v107
    %v109 = vrot.slane %v96, %v108
    %v110 = vlaneseq
    %v111 = vshrl.u32 %v110, 7
    %v112 = vsub.s32 3, %v111
    %v113 = vrot.slane %v96, %v112
    %v114 = vlaneseq
    %v115 = vshrl.u32 %v114, 7
    %v116 = vsub.s32 4, %v115
    %v117 = vrot.slane %v96, %v116
    %v118 = vlaneseq
    %v119 = vshrl.u32 %v118, 7
    %v120 = vsub.s32 5, %v119
    %v121 = vrot.slane %v96, %v120
    %v122 = vlaneseq
    %v123 = vshrl.u32 %v122, 7
    %v124 = vsub.s32 6, %v123
    %v125 = vrot.slane %v96, %v124
    %v126 = vlaneseq
    %v127 = vshrl.u32 %v126, 7
    %v128 = vsub.s32 7, %v127
    %v129 = vrot.slane %v96, %v128
    %vm138 = vcmask 523264
    %v140 = vsel %vm138, %v31, 0
    %142 = vmatprep.subr.mxu0 %v33
    %143 = vmatpush1.msra.mxu0 %v32
    %144 = vmatprep.subr.mxu0 %v41
    %145 = vmatpush1.msra.mxu0 %v40
    %146 = vmatprep.subr.mxu0 %v49
    %147 = vmatpush1.msra.mxu0 %v48
    %148 = vmatprep.subr.mxu0 %v57
    %149 = vmatpush1.msra.mxu0 %v56
    %150 = vmatprep.subr.mxu0 %v65
    %151 = vmatpush1.msra.mxu0 %v64
    %152 = vmatprep.subr.mxu0 %v73
    %153 = vmatpush1.msra.mxu0 %v72
    %154 = vmatprep.subr.mxu0 %v81
    %155 = vmatpush1.msra.mxu0 %v80
    %156 = vmatprep.subr.mxu0 %v89
    %157 = vmatpush1.msra.mxu0 %v88
    %158 = vmatprep.subr.mxu0 0.0
    %159 = vmatpush1.msra.mxu0 0.0
    %160 = vmatprep.subr.mxu0 0.0
    %161 = vmatpush1.msra.mxu0 0.0
    %162 = vmatprep.subr.mxu0 0.0
    %163 = vmatpush1.msra.mxu0 0.0
    %164 = vmatprep.subr.mxu0 0.0
    %165 = vmatpush1.msra.mxu0 0.0
    %166 = vmatprep.subr.mxu0 0.0
    %167 = vmatpush1.msra.mxu0 0.0
    %168 = vmatprep.subr.mxu0 0.0
    %169 = vmatpush1.msra.mxu0 0.0
    %170 = vmatprep.subr.mxu0 0.0
    %171 = vmatpush1.msra.mxu0 0.0
    %172 = vmatprep.subr.mxu0 0.0
    %173 = vmatpush1.msra.mxu0 0.0
    %174 = vmatprep.subr.mxu0 0.0
    %175 = vmatpush1.msra.mxu0 0.0
    %176 = vmatprep.subr.mxu0 0.0
    %177 = vmatpush1.msra.mxu0 0.0
    %178 = vmatprep.subr.mxu0 0.0
    %179 = vmatpush1.msra.mxu0 0.0
    %180 = vmatprep.subr.mxu0 0.0
    %181 = vmatpush1.msra.mxu0 0.0
    %182 = vmatprep.subr.mxu0 0.0
    %183 = vmatpush1.msra.mxu0 0.0
    %184 = vmatprep.subr.mxu0 0.0
    %185 = vmatpush1.msra.mxu0 0.0
    %186 = vmatprep.subr.mxu0 0.0
    %187 = vmatpush1.msra.mxu0 0.0
    %188 = vmatprep.subr.mxu0 0.0
    %189 = vmatpush1.msra.mxu0 0.0
    %190 = vmatprep.subr.mxu0 0.0
    %191 = vmatpush1.msra.mxu0 0.0
    %192 = vmatprep.subr.mxu0 0.0
    %193 = vmatpush1.msra.mxu0 0.0
    %194 = vmatprep.subr.mxu0 0.0
    %195 = vmatpush1.msra.mxu0 0.0
    %196 = vmatprep.subr.mxu0 0.0
    %197 = vmatpush1.msra.mxu0 0.0
    %198 = vmatprep.subr.mxu0 0.0
    %199 = vmatpush1.msra.mxu0 0.0
    %200 = vmatprep.subr.mxu0 0.0
    %201 = vmatpush1.msra.mxu0 0.0
    %202 = vmatprep.subr.mxu0 0.0
    %203 = vmatpush1.msra.mxu0 0.0
    %204 = vmatprep.subr.mxu0 0.0
    %205 = vmatpush1.msra.mxu0 0.0
    %206 = vmatprep.mubr.f32.mxu0 0.0
    %207 = vmatmul.mubr.f32.gmra.mrb[0].mxu0 %v140
    %v208 = vpop.f32.mrb[0].mxu0
    %v209 = vadd.f32 %v101, %v208
    %v210 = vpop.f32.mrb[0].mxu0
    %v211 = vadd.f32 %v105, %v210
    %212 = vdwg.mxu0
    %213 = vmatprep.subr.mxu0 %v35
    %214 = vmatpush1.msra.mxu0 %v34
    %215 = vmatprep.subr.mxu0 %v43
    %216 = vmatpush1.msra.mxu0 %v42
    %217 = vmatprep.subr.mxu0 %v51
    %218 = vmatpush1.msra.mxu0 %v50
    %219 = vmatprep.subr.mxu0 %v59
    %220 = vmatpush1.msra.mxu0 %v58
    %221 = vmatprep.subr.mxu0 %v67
    %222 = vmatpush1.msra.mxu0 %v66
    %223 = vmatprep.subr.mxu0 %v75
    %224 = vmatpush1.msra.mxu0 %v74
    %225 = vmatprep.subr.mxu0 %v83
    %226 = vmatpush1.msra.mxu0 %v82
    %227 = vmatprep.subr.mxu0 %v91
    %228 = vmatpush1.msra.mxu0 %v90
    %229 = vmatprep.subr.mxu0 0.0
    %230 = vmatpush1.msra.mxu0 0.0
    %231 = vmatprep.subr.mxu0 0.0
    %232 = vmatpush1.msra.mxu0 0.0
    %233 = vmatprep.subr.mxu0 0.0
    %234 = vmatpush1.msra.mxu0 0.0
    %235 = vmatprep.subr.mxu0 0.0
    %236 = vmatpush1.msra.mxu0 0.0
    %237 = vmatprep.subr.mxu0 0.0
    %238 = vmatpush1.msra.mxu0 0.0
    %239 = vmatprep.subr.mxu0 0.0
    %240 = vmatpush1.msra.mxu0 0.0
    %241 = vmatprep.subr.mxu0 0.0
    %242 = vmatpush1.msra.mxu0 0.0
    %243 = vmatprep.subr.mxu0 0.0
    %244 = vmatpush1.msra.mxu0 0.0
    %245 = vmatprep.subr.mxu0 0.0
    %246 = vmatpush1.msra.mxu0 0.0
    %247 = vmatprep.subr.mxu0 0.0
    %248 = vmatpush1.msra.mxu0 0.0
    %249 = vmatprep.subr.mxu0 0.0
    %250 = vmatpush1.msra.mxu0 0.0
    %251 = vmatprep.subr.mxu0 0.0
    %252 = vmatpush1.msra.mxu0 0.0
    %253 = vmatprep.subr.mxu0 0.0
    %254 = vmatpush1.msra.mxu0 0.0
    %255 = vmatprep.subr.mxu0 0.0
    %256 = vmatpush1.msra.mxu0 0.0
    %257 = vmatprep.subr.mxu0 0.0
    %258 = vmatpush1.msra.mxu0 0.0
    %259 = vmatprep.subr.mxu0 0.0
    %260 = vmatpush1.msra.mxu0 0.0
    %261 = vmatprep.subr.mxu0 0.0
    %262 = vmatpush1.msra.mxu0 0.0
    %263 = vmatprep.subr.mxu0 0.0
    %264 = vmatpush1.msra.mxu0 0.0
    %265 = vmatprep.subr.mxu0 0.0
    %266 = vmatpush1.msra.mxu0 0.0
    %267 = vmatprep.subr.mxu0 0.0
    %268 = vmatpush1.msra.mxu0 0.0
    %269 = vmatprep.subr.mxu0 0.0
    %270 = vmatpush1.msra.mxu0 0.0
    %271 = vmatprep.subr.mxu0 0.0
    %272 = vmatpush1.msra.mxu0 0.0
    %273 = vmatprep.subr.mxu0 0.0
    %274 = vmatpush1.msra.mxu0 0.0
    %275 = vmatprep.subr.mxu0 0.0
    %276 = vmatpush1.msra.mxu0 0.0
    %277 = vmatprep.mubr.f32.mxu0 0.0
    %278 = vmatmul.mubr.f32.gmra.mrb[0].mxu0 %v140
    %v279 = vpop.f32.mrb[0].mxu0
    %v280 = vadd.f32 %v109, %v279
    %v281 = vpop.f32.mrb[0].mxu0
    %v282 = vadd.f32 %v113, %v281
    %283 = vdwg.mxu0
    %284 = vmatprep.subr.mxu0 %v37
    %285 = vmatpush1.msra.mxu0 %v36
    %286 = vmatprep.subr.mxu0 %v45
    %287 = vmatpush1.msra.mxu0 %v44
    %288 = vmatprep.subr.mxu0 %v53
    %289 = vmatpush1.msra.mxu0 %v52
    %290 = vmatprep.subr.mxu0 %v61
    %291 = vmatpush1.msra.mxu0 %v60
    %292 = vmatprep.subr.mxu0 %v69
    %293 = vmatpush1.msra.mxu0 %v68
    %294 = vmatprep.subr.mxu0 %v77
    %295 = vmatpush1.msra.mxu0 %v76
    %296 = vmatprep.subr.mxu0 %v85
    %297 = vmatpush1.msra.mxu0 %v84
    %298 = vmatprep.subr.mxu0 %v93
    %299 = vmatpush1.msra.mxu0 %v92
    %300 = vmatprep.subr.mxu0 0.0
    %301 = vmatpush1.msra.mxu0 0.0
    %302 = vmatprep.subr.mxu0 0.0
    %303 = vmatpush1.msra.mxu0 0.0
    %304 = vmatprep.subr.mxu0 0.0
    %305 = vmatpush1.msra.mxu0 0.0
    %306 = vmatprep.subr.mxu0 0.0
    %307 = vmatpush1.msra.mxu0 0.0
    %308 = vmatprep.subr.mxu0 0.0
    %309 = vmatpush1.msra.mxu0 0.0
    %310 = vmatprep.subr.mxu0 0.0
    %311 = vmatpush1.msra.mxu0 0.0
    %312 = vmatprep.subr.mxu0 0.0
    %313 = vmatpush1.msra.mxu0 0.0
    %314 = vmatprep.subr.mxu0 0.0
    %315 = vmatpush1.msra.mxu0 0.0
    %316 = vmatprep.subr.mxu0 0.0
    %317 = vmatpush1.msra.mxu0 0.0
    %318 = vmatprep.subr.mxu0 0.0
    %319 = vmatpush1.msra.mxu0 0.0
    %320 = vmatprep.subr.mxu0 0.0
    %321 = vmatpush1.msra.mxu0 0.0
    %322 = vmatprep.subr.mxu0 0.0
    %323 = vmatpush1.msra.mxu0 0.0
    %324 = vmatprep.subr.mxu0 0.0
    %325 = vmatpush1.msra.mxu0 0.0
    %326 = vmatprep.subr.mxu0 0.0
    %327 = vmatpush1.msra.mxu0 0.0
    %328 = vmatprep.subr.mxu0 0.0
    %329 = vmatpush1.msra.mxu0 0.0
    %330 = vmatprep.subr.mxu0 0.0
    %331 = vmatpush1.msra.mxu0 0.0
    %332 = vmatprep.subr.mxu0 0.0
    %333 = vmatpush1.msra.mxu0 0.0
    %334 = vmatprep.subr.mxu0 0.0
    %335 = vmatpush1.msra.mxu0 0.0
    %336 = vmatprep.subr.mxu0 0.0
    %337 = vmatpush1.msra.mxu0 0.0
    %338 = vmatprep.subr.mxu0 0.0
    %339 = vmatpush1.msra.mxu0 0.0
    %340 = vmatprep.subr.mxu0 0.0
    %341 = vmatpush1.msra.mxu0 0.0
    %342 = vmatprep.subr.mxu0 0.0
    %343 = vmatpush1.msra.mxu0 0.0
    %344 = vmatprep.subr.mxu0 0.0
    %345 = vmatpush1.msra.mxu0 0.0
    %346 = vmatprep.subr.mxu0 0.0
    %347 = vmatpush1.msra.mxu0 0.0
    %348 = vmatprep.mubr.f32.mxu0 0.0
    %349 = vmatmul.mubr.f32.gmra.mrb[0].mxu0 %v140
    %v350 = vpop.f32.mrb[0].mxu0
    %v351 = vadd.f32 %v117, %v350
    %v352 = vpop.f32.mrb[0].mxu0
    %v353 = vadd.f32 %v121, %v352
    %354 = vdwg.mxu0
    %355 = vmatprep.subr.mxu0 %v39
    %356 = vmatpush1.msra.mxu0 %v38
    %357 = vmatprep.subr.mxu0 %v47
    %358 = vmatpush1.msra.mxu0 %v46
    %359 = vmatprep.subr.mxu0 %v55
    %360 = vmatpush1.msra.mxu0 %v54
    %361 = vmatprep.subr.mxu0 %v63
    %362 = vmatpush1.msra.mxu0 %v62
    %363 = vmatprep.subr.mxu0 %v71
    %364 = vmatpush1.msra.mxu0 %v70
    %365 = vmatprep.subr.mxu0 %v79
    %366 = vmatpush1.msra.mxu0 %v78
    %367 = vmatprep.subr.mxu0 %v87
    %368 = vmatpush1.msra.mxu0 %v86
    %369 = vmatprep.subr.mxu0 %v95
    %370 = vmatpush1.msra.mxu0 %v94
    %371 = vmatprep.subr.mxu0 0.0
    %372 = vmatpush1.msra.mxu0 0.0
    %373 = vmatprep.subr.mxu0 0.0
    %374 = vmatpush1.msra.mxu0 0.0
    %375 = vmatprep.subr.mxu0 0.0
    %376 = vmatpush1.msra.mxu0 0.0
    %377 = vmatprep.subr.mxu0 0.0
    %378 = vmatpush1.msra.mxu0 0.0
    %379 = vmatprep.subr.mxu0 0.0
    %380 = vmatpush1.msra.mxu0 0.0
    %381 = vmatprep.subr.mxu0 0.0
    %382 = vmatpush1.msra.mxu0 0.0
    %383 = vmatprep.subr.mxu0 0.0
    %384 = vmatpush1.msra.mxu0 0.0
    %385 = vmatprep.subr.mxu0 0.0
    %386 = vmatpush1.msra.mxu0 0.0
    %387 = vmatprep.subr.mxu0 0.0
    %388 = vmatpush1.msra.mxu0 0.0
    %389 = vmatprep.subr.mxu0 0.0
    %390 = vmatpush1.msra.mxu0 0.0
    %391 = vmatprep.subr.mxu0 0.0
    %392 = vmatpush1.msra.mxu0 0.0
    %393 = vmatprep.subr.mxu0 0.0
    %394 = vmatpush1.msra.mxu0 0.0
    %395 = vmatprep.subr.mxu0 0.0
    %396 = vmatpush1.msra.mxu0 0.0
    %397 = vmatprep.subr.mxu0 0.0
    %398 = vmatpush1.msra.mxu0 0.0
    %399 = vmatprep.subr.mxu0 0.0
    %400 = vmatpush1.msra.mxu0 0.0
    %401 = vmatprep.subr.mxu0 0.0
    %402 = vmatpush1.msra.mxu0 0.0
    %403 = vmatprep.subr.mxu0 0.0
    %404 = vmatpush1.msra.mxu0 0.0
    %405 = vmatprep.subr.mxu0 0.0
    %406 = vmatpush1.msra.mxu0 0.0
    %407 = vmatprep.subr.mxu0 0.0
    %408 = vmatpush1.msra.mxu0 0.0
    %409 = vmatprep.subr.mxu0 0.0
    %410 = vmatpush1.msra.mxu0 0.0
    %411 = vmatprep.subr.mxu0 0.0
    %412 = vmatpush1.msra.mxu0 0.0
    %413 = vmatprep.subr.mxu0 0.0
    %414 = vmatpush1.msra.mxu0 0.0
    %415 = vmatprep.subr.mxu0 0.0
    %416 = vmatpush1.msra.mxu0 0.0
    %417 = vmatprep.subr.mxu0 0.0
    %418 = vmatpush1.msra.mxu0 0.0
    %419 = vmatprep.mubr.f32.mxu0 0.0
    %420 = vmatmul.mubr.f32.gmra.mrb[0].mxu0 %v140
    %v421 = vpop.f32.mrb[0].mxu0
    %v422 = vadd.f32 %v125, %v421
    %v423 = vpop.f32.mrb[0].mxu0
    %v424 = vadd.f32 %v129, %v423
    %425 = vdwg.mxu0
    %v426 = vmul.f32 %v209, %v351
    %v427 = vmul.f32 %v211, %v353
    %v428 = vmul.f32 %v280, %v422
    %v429 = vmul.f32 %v282, %v424
    %v430 = vadd.f32 %v426, %v427
    %432 = vrot.lane.b32.xlu0 %v430, 64
    %v433 = vpop.permute.xlu0 %432
    %v435 = vadd.f32 %v430, %v433
    %v436 = vadd.f32 %v428, %v429
    %438 = vrot.lane.b32.xlu0 %v436, 64
    %v439 = vpop.permute.xlu0 %438
    %v441 = vadd.f32 %v436, %v439
    %v442 = vmul.f32 %v435, %v441
    %v443 = vld [vmem:[%s3] sm:$0xff]
    %v444 = vld [vmem:[%s3 + $0x8] sm:$0xff]
    %v445 = vld [vmem:[%s3 + $0x10] sm:$0xff]
    %v446 = vld [vmem:[%s3 + $0x18] sm:$0xff]
    %v447 = vld [vmem:[%s3 + $0x20] sm:$0xff]
    %v448 = vld [vmem:[%s3 + $0x28] sm:$0xff]
    %v449 = vld [vmem:[%s3 + $0x30] sm:$0xff]
    %v450 = vld [vmem:[%s3 + $0x38] sm:$0xff]
    %v452 = vsel %vm138, %v442, 0
    %454 = vmatprep.subr.mxu0 0.0
    %455 = vmatpush1.msra.mxu0 %v443
    %456 = vmatprep.subr.mxu0 0.0
    %457 = vmatpush1.msra.mxu0 %v444
    %458 = vmatprep.subr.mxu0 0.0
    %459 = vmatpush1.msra.mxu0 %v445
    %460 = vmatprep.subr.mxu0 0.0
    %461 = vmatpush1.msra.mxu0 %v446
    %462 = vmatprep.subr.mxu0 0.0
    %463 = vmatpush1.msra.mxu0 %v447
    %464 = vmatprep.subr.mxu0 0.0
    %465 = vmatpush1.msra.mxu0 %v448
    %466 = vmatprep.subr.mxu0 0.0
    %467 = vmatpush1.msra.mxu0 %v449
    %468 = vmatprep.subr.mxu0 0.0
    %469 = vmatpush1.msra.mxu0 %v450
    %470 = vmatprep.subr.mxu0 0.0
    %471 = vmatpush1.msra.mxu0 0.0
    %472 = vmatprep.subr.mxu0 0.0
    %473 = vmatpush1.msra.mxu0 0.0
    %474 = vmatprep.subr.mxu0 0.0
    %475 = vmatpush1.msra.mxu0 0.0
    %476 = vmatprep.subr.mxu0 0.0
    %477 = vmatpush1.msra.mxu0 0.0
    %478 = vmatprep.subr.mxu0 0.0
    %479 = vmatpush1.msra.mxu0 0.0
    %480 = vmatprep.subr.mxu0 0.0
    %481 = vmatpush1.msra.mxu0 0.0
    %482 = vmatprep.subr.mxu0 0.0
    %483 = vmatpush1.msra.mxu0 0.0
    %484 = vmatprep.subr.mxu0 0.0
    %485 = vmatpush1.msra.mxu0 0.0
    %486 = vmatprep.subr.mxu0 0.0
    %487 = vmatpush1.msra.mxu0 0.0
    %488 = vmatprep.subr.mxu0 0.0
    %489 = vmatpush1.msra.mxu0 0.0
    %490 = vmatprep.subr.mxu0 0.0
    %491 = vmatpush1.msra.mxu0 0.0
    %492 = vmatprep.subr.mxu0 0.0
    %493 = vmatpush1.msra.mxu0 0.0
    %494 = vmatprep.subr.mxu0 0.0
    %495 = vmatpush1.msra.mxu0 0.0
    %496 = vmatprep.subr.mxu0 0.0
    %497 = vmatpush1.msra.mxu0 0.0
    %498 = vmatprep.subr.mxu0 0.0
    %499 = vmatpush1.msra.mxu0 0.0
    %500 = vmatprep.subr.mxu0 0.0
    %501 = vmatpush1.msra.mxu0 0.0
    %502 = vmatprep.subr.mxu0 0.0
    %503 = vmatpush1.msra.mxu0 0.0
    %504 = vmatprep.subr.mxu0 0.0
    %505 = vmatpush1.msra.mxu0 0.0
    %506 = vmatprep.subr.mxu0 0.0
    %507 = vmatpush1.msra.mxu0 0.0
    %508 = vmatprep.subr.mxu0 0.0
    %509 = vmatpush1.msra.mxu0 0.0
    %510 = vmatprep.subr.mxu0 0.0
    %511 = vmatpush1.msra.mxu0 0.0
    %512 = vmatprep.subr.mxu0 0.0
    %513 = vmatpush1.msra.mxu0 0.0
    %514 = vmatprep.subr.mxu0 0.0
    %515 = vmatpush1.msra.mxu0 0.0
    %516 = vmatprep.subr.mxu0 0.0
    %517 = vmatpush1.msra.mxu0 0.0
    %518 = vmatprep.mubr.f32.mxu0 0.0
    %519 = vmatmul.mubr.f32.gmra.mrb[0].mxu0 %v452
    %v520 = vpop.f32.mrb[0].mxu0
    %v521 = vadd.f32 0.0, %v520
    %v522 = vpop.f32.mrb[0].mxu0
    %523 = vdwg.mxu0
    %vm524 = vcmask 31744
    %v525 = vsel %vm524, %v521, -inf
    %526 = vmax.xlane.f32.xlu0 %v525
    %v527 = vpop.xlane.xlu0 %526
    %v528 = vsub.f32 %v521, %v527
    %v529 = vmul.f32 %v528, 1.442695
    %v530 = vpow.pop %v529
    %v531 = vsel %vm524, %v530, 0.0
    %532 = vadd.xlane.f32.xlu0 %v531
    %v533 = vpop.xlane.xlu0 %532
    %v534 = vlog2.pop %v533
    %v535 = vmul.f32 %v534, 0.6931472
    %v536 = vsub.f32 %v528, %v535
    %537 = vst.msk [vmem:[%s4] sm:$0xff] %vm524, %v536
    // Predicated region
    $region22: #{tpu_custom_call.1} parent=1 // pred_check
      _
    $region23: #{tpu_custom_call.1} parent=1 // pred_check_branch
      %539 = sbr.rel (0) target = $region25
    $region24: #{tpu_custom_call.1} parent=1 // pred_region
      _
    $region25: #{tpu_custom_call.1} parent=1 // pred_fallthru
      _
    // Predicated region
    $region26: #{tpu_custom_call.1} parent=1 // pred_check
      _
    $region27: #{tpu_custom_call.1} parent=1 // pred_check_branch
      %541 = sbr.rel (0) target = $region29
    $region28: #{tpu_custom_call.1} parent=1 // pred_region
      _
    $region29: #{tpu_custom_call.1} parent=1 // pred_fallthru
      _
    %542 = vsyncpa [#allocation3], 1

</llo_original>
